<compile_context>
chip_gen: v7x
topology: tpu7x:2x2x1
jax: 0.10.0
libtpu: 0.0.40
codegen_flags: <defaults>
</compile_context>

<pallas_src>
import functools

import jax
import jax.numpy as jnp
from jax.experimental import pallas as pl
from jax.experimental.pallas import tpu as pltpu

LANE = 128      # vreg lane width
SUBLANE = 8     # vreg sublane count (f32)


def _round_up(x, m):
    return ((x + m - 1) // m) * m


def _device_info():
    """Returns (physical VMEM bytes, #TensorCores per chip, bf16-native VPU?)."""
    kind = ""
    try:
        kind = jax.devices()[0].device_kind.lower()
    except Exception:
        pass
    try:
        phys_vmem = int(pltpu.get_tpu_info().vmem_capacity_bytes)
    except Exception:
        phys_vmem = 64 << 20            # conservative (v7x-sized) fallback
    is_v7 = ("v7" in kind) or ("7x" in kind)
    old_gen = any(t in kind for t in ("v2", "v3", "v4", "v5"))  # no bf16 VPU
    num_tc = 2 if is_v7 else 1
    return phys_vmem, num_tc, (not old_gen)


def mlp_kernel(x_ref, w1_ref, b1_ref, w2_ref, b2_ref, w3_ref, b3_ref, o_ref,
               *, compute_dtype, bf16_epilogue):
    # x arrives in native f32; cast to bf16 in-kernel (VPU work, hidden under MXU).
    x = x_ref[...].astype(compute_dtype)

    # Layer 1: bf16 x bf16 -> f32 on the MXU.
    h = jnp.dot(x, w1_ref[...], preferred_element_type=jnp.float32)
    if bf16_epilogue:
        h = jnp.maximum(h.astype(compute_dtype) + b1_ref[...], 0.0)
    else:
        h = jnp.maximum(h + b1_ref[...], 0.0).astype(compute_dtype)

    # TODO(synk): dropout is identity here (eval-mode semantics); training-mode
    # dropout would draw a keep-mask via pltpu.prng_seed / pltpu.prng_random_bits.

    # Layer 2.
    h = jnp.dot(h, w2_ref[...], preferred_element_type=jnp.float32)
    if bf16_epilogue:
        h = jnp.maximum(h.astype(compute_dtype) + b2_ref[...], 0.0)
    else:
        h = jnp.maximum(h + b2_ref[...], 0.0).astype(compute_dtype)

    # Output layer (no activation).  Output slab is 128-lane padded so the
    # store lowers to full-lane unmasked vst.
    out = jnp.dot(h, w3_ref[...], preferred_element_type=jnp.float32)
    out = out + b3_ref[...]
    o_ref[...] = out.astype(o_ref.dtype)


def _pad2d(a, rows, cols, dtype):
    out = jnp.zeros((rows, cols), dtype)
    return out.at[: a.shape[0], : a.shape[1]].set(a.astype(dtype))


def mlp_forward(x, w1, b1, w2, b2, w3, b3, *, block_batch=None,
                compute_dtype=jnp.bfloat16, out_dtype=jnp.bfloat16):
    """y = relu(x@W1+b1) -> relu(.@W2+b2) -> .@W3+b3 (dropout = identity).

    Weights are stored pre-transposed as (in_features, out_features).  Only the
    *output* feature dims are zero-padded to 128-lane multiples (provably does
    not change the math); x stays in its native f32 layout and only gets its
    batch rows padded (with zeros) when the grid requires it.
    """
    B, n_in = x.shape
    h1d, h2d, n_out = w1.shape[1], w2.shape[1], w3.shape[1]
    h1_p = _round_up(h1d, LANE)
    h2_p = _round_up(h2d, LANE)
    n_out_p = _round_up(n_out, LANE)

    phys_vmem, num_tc, bf16_vpu = _device_info()
    bf16_epilogue = bool(bf16_vpu) and compute_dtype == jnp.bfloat16

    # Generation-aware VMEM budget: ~80% of physical, never above 100 MiB
    # (v7x: ~51 MiB of 64 MiB; v5e/v6e: ~100 MiB of 128 MiB).
    vmem_cap = min(100 << 20, int(phys_vmem * 0.8))

    # ---- batch tiling ------------------------------------------------------
    if block_batch is None:
        max_tile = 2048 if num_tc == 1 else 1024  # big tiles on single-TC chips
        block_batch = min(max_tile, _round_up(B, SUBLANE))
        if num_tc >= 2:
            # Split across the TensorCores, but never below 256-row tiles.
            while (_round_up(B, block_batch) // block_batch) < num_tc and block_batch > 256:
                block_batch = max(256, block_batch // 2)
    block_batch = max(SUBLANE, _round_up(block_batch, SUBLANE))

    out_elem = jnp.dtype(out_dtype).itemsize
    weight_bytes = (n_in * h1_p + h1_p * h2_p + h2_p * n_out_p) * 2
    bias_bytes = (h1_p + h2_p) * (2 if bf16_epilogue else 4) + n_out_p * 4

    def _est_vmem(bb, wbuf):
        return (2 * bb * n_in * 4              # x tiles, double-buffered, f32
                + 2 * bb * n_out_p * out_elem  # out tiles, double-buffered
                + wbuf * (weight_bytes + bias_bytes)
                + bb * n_in * 2                # in-kernel bf16 copy of x
                + bb * (h1_p + h2_p) * 6       # f32 accum + bf16 epilogue copies
                + bb * n_out_p * 4)            # f32 result before final cast

    if _est_vmem(SUBLANE, 1) > vmem_cap:
        # TODO(synk): fall back to a 2-D grid that tiles the hidden/output
        # feature dims (or per-layer calls) instead of resident weights.
        raise ValueError("Resident-weight MLP kernel does not fit in VMEM; "
                         "hidden dims too large for this tiling.")
    floor_bb = 256 if (num_tc >= 2 and block_batch > 256) else SUBLANE
    while _est_vmem(block_batch, 2) + (4 << 20) > vmem_cap and block_batch > floor_bb:
        block_batch = _round_up(max(floor_bb, block_batch // 2), SUBLANE)

    B_p = _round_up(B, block_batch)
    if num_tc >= 2:
        # Even grid so both TensorCores stay busy every pair of steps.
        B_p = _round_up(B_p, num_tc * block_batch)
    grid = (B_p // block_batch,)

    vmem_limit = min(vmem_cap, max(32 << 20, _est_vmem(block_batch, 2) + (8 << 20)))

    # ---- operand prep (weights/biases only; x keeps its native f32 layout) --
    x_in = x if B_p == B else jnp.pad(x, ((0, B_p - B), (0, 0)))
    b_dtype = compute_dtype if bf16_epilogue else jnp.float32
    w1p = _pad2d(w1, n_in, h1_p, compute_dtype)
    w2p = _pad2d(w2, h1_p, h2_p, compute_dtype)
    w3p = _pad2d(w3, h2_p, n_out_p, compute_dtype)
    b1p = _pad2d(b1.reshape(1, -1), 1, h1_p, b_dtype)
    b2p = _pad2d(b2.reshape(1, -1), 1, h2_p, b_dtype)
    b3p = _pad2d(b3.reshape(1, -1), 1, n_out_p, jnp.float32)

    flops = 2 * B_p * (n_in * h1_p + h1_p * h2_p + h2_p * n_out_p)
    bytes_accessed = (B_p * n_in * 4            # x read as f32 (no wrapper pad pass)
                      + weight_bytes + bias_bytes
                      + B_p * n_out_p * out_elem)

    kernel = functools.partial(mlp_kernel, compute_dtype=compute_dtype,
                               bf16_epilogue=bf16_epilogue)

    def _run(single_buffer_weights):
        def _const_spec(shape):
            # Constant index map -> block never re-fetched across the grid;
            # single-buffering it halves the resident-weight VMEM footprint.
            if single_buffer_weights:
                return pl.BlockSpec(shape, lambda i: (0, 0),
                                    pipeline_mode=pl.Buffered(1))
            return pl.BlockSpec(shape, lambda i: (0, 0))

        return pl.pallas_call(
            kernel,
            out_shape=jax.ShapeDtypeStruct((B_p, n_out_p), out_dtype),
            grid_spec=pltpu.PrefetchScalarGridSpec(
                num_scalar_prefetch=0,
                grid=grid,
                in_specs=[
                    pl.BlockSpec((block_batch, n_in), lambda i: (i, 0)),  # x tile (f32)
                    _const_spec((n_in, h1_p)),     # W1 (resident)
                    _const_spec((1, h1_p)),        # b1
                    _const_spec((h1_p, h2_p)),     # W2
                    _const_spec((1, h2_p)),        # b2
                    _const_spec((h2_p, n_out_p)),  # W3
                    _const_spec((1, n_out_p)),     # b3
                ],
                out_specs=pl.BlockSpec((block_batch, n_out_p), lambda i: (i, 0)),
            ),
            compiler_params=pltpu.CompilerParams(
                dimension_semantics=("parallel",),
                vmem_limit_bytes=int(vmem_limit),
            ),
            cost_estimate=pl.CostEstimate(
                flops=int(flops),
                transcendentals=0,
                bytes_accessed=int(bytes_accessed),
            ),
        )(x_in, w1p, b1p, w2p, b2p, w3p, b3p)

    try:
        out_padded = _run(single_buffer_weights=True)
    except Exception:
        # Fallback if this JAX build rejects pl.Buffered(1) on a BlockSpec.
        out_padded = _run(single_buffer_weights=False)

    # Un-pad: keep only the real rows and the real output column(s).
    return out_padded[:B, :n_out]


def init_linear(key, fan_in, fan_out):
    # Deterministic init mimicking PyTorch nn.Linear: U(-1/sqrt(fan_in), +).
    kw, kb = jax.random.split(key)
    bound = 1.0 / jnp.sqrt(jnp.float32(fan_in))
    # Stored as (in, out) — i.e. the transpose of PyTorch's (out, in) layout.
    w = jax.random.uniform(kw, (fan_in, fan_out), jnp.float32, -bound, bound)
    b = jax.random.uniform(kb, (1, fan_out), jnp.float32, -bound, bound)
    return w, b


def reference_forward_f32(x, w1, b1, w2, b2, w3, b3):
    h = jnp.maximum(x @ w1 + b1, 0.0)
    h = jnp.maximum(h @ w2 + b2, 0.0)
    return h @ w3 + b3


def reference_forward_matched(x, w1, b1, w2, b2, w3, b3, *, bf16_epilogue,
                              compute_dtype=jnp.bfloat16,
                              out_dtype=jnp.bfloat16):
    """Same bf16-operand / f32-accumulate / epilogue recipe as the kernel."""
    c = compute_dtype
    h = jnp.dot(x.astype(c), w1.astype(c), preferred_element_type=jnp.float32)
    if bf16_epilogue:
        h = jnp.maximum(h.astype(c) + b1.astype(c), 0.0)
    else:
        h = jnp.maximum(h + b1, 0.0).astype(c)
    h = jnp.dot(h, w2.astype(c), preferred_element_type=jnp.float32)
    if bf16_epilogue:
        h = jnp.maximum(h.astype(c) + b2.astype(c), 0.0)
    else:
        h = jnp.maximum(h + b2, 0.0).astype(c)
    out = jnp.dot(h, w3.astype(c), preferred_element_type=jnp.float32) + b3
    return out.astype(out_dtype)


if __name__ == "__main__":
    # Small shapes consistent with Net(n_input, n_hidden=(h1, h2), n_output=1).
    # (At this size the kernel is pure fixed overhead; the tiling / bf16 /
    #  single-buffer choices only pay off once B and the hidden dims grow.)
    B, n_input, n_h1, n_h2, n_output = 8, 32, 64, 64, 1

    key = jax.random.PRNGKey(0)
    kx, k1, k2, k3 = jax.random.split(key, 4)

    x = jax.random.normal(kx, (B, n_input), jnp.float32)
    w1, b1 = init_linear(k1, n_input, n_h1)
    w2, b2 = init_linear(k2, n_h1, n_h2)
    w3, b3 = init_linear(k3, n_h2, n_output)

    out = jax.block_until_ready(mlp_forward(x, w1, b1, w2, b2, w3, b3))

    _, _, _bf16_vpu = _device_info()
    ref_matched = reference_forward_matched(x, w1, b1, w2, b2, w3, b3,
                                            bf16_epilogue=_bf16_vpu)
    ref_f32 = reference_forward_f32(x, w1, b1, w2, b2, w3, b3)

    assert out.shape == (B, n_output), out.shape
    out_f32 = out.astype(jnp.float32)
    assert jnp.allclose(out_f32, ref_matched.astype(jnp.float32),
                        atol=2e-2, rtol=2e-2), \
        "mismatch vs bf16-recipe-matched JAX reference"
    assert jnp.allclose(out_f32, ref_f32, atol=6e-2, rtol=6e-2), \
        "mismatch vs fp32 JAX reference"

    print("KERNEL_OK")
</pallas_src>

<mosaic_0001>
module attributes {stable_mosaic.version = 11 : i64} {
  func.func @mlp_kernel(%arg0: i32, %arg1: memref<8x32xf32, #tpu.memory_space<vmem>>, %arg2: memref<32x128xbf16, #tpu.memory_space<vmem>>, %arg3: memref<1x128xbf16, #tpu.memory_space<vmem>>, %arg4: memref<128x128xbf16, #tpu.memory_space<vmem>>, %arg5: memref<1x128xbf16, #tpu.memory_space<vmem>>, %arg6: memref<128x128xbf16, #tpu.memory_space<vmem>>, %arg7: memref<1x128xf32, #tpu.memory_space<vmem>>, %arg8: memref<8x128xbf16, #tpu.memory_space<vmem>>) attributes {dimension_semantics = [#tpu.dimension_semantics<parallel>], iteration_bounds = array<i64: 1>, scalar_prefetch = 0 : i64, scratch_operands = 0 : i64, tpu.core_type = #tpu.core_type<tc>, window_params = [{transform_indices = @transform_0, window_bounds = array<i64: 8, 32>}, {pipeline_mode = #tpu.pipeline_mode<synchronous>, transform_indices = @transform_1, window_bounds = array<i64: 32, 128>}, {pipeline_mode = #tpu.pipeline_mode<synchronous>, transform_indices = @transform_2, window_bounds = array<i64: 1, 128>}, {pipeline_mode = #tpu.pipeline_mode<synchronous>, transform_indices = @transform_3, window_bounds = array<i64: 128, 128>}, {pipeline_mode = #tpu.pipeline_mode<synchronous>, transform_indices = @transform_4, window_bounds = array<i64: 1, 128>}, {pipeline_mode = #tpu.pipeline_mode<synchronous>, transform_indices = @transform_5, window_bounds = array<i64: 128, 128>}, {pipeline_mode = #tpu.pipeline_mode<synchronous>, transform_indices = @transform_6, window_bounds = array<i64: 1, 128>}, {transform_indices = @transform_7, window_bounds = array<i64: 8, 128>}]} {
    %c0 = arith.constant 0 : index
    %c0_0 = arith.constant 0 : index
    %0 = vector.load %arg1[%c0, %c0_0] : memref<8x32xf32, #tpu.memory_space<vmem>>, vector<8x32xf32>
    %1 = arith.truncf %0 : vector<8x32xf32> to vector<8x32xbf16>
    %c0_1 = arith.constant 0 : index
    %c0_2 = arith.constant 0 : index
    %2 = vector.load %arg2[%c0_1, %c0_2] : memref<32x128xbf16, #tpu.memory_space<vmem>>, vector<32x128xbf16>
    %cst = arith.constant dense<0.000000e+00> : vector<8x128xf32>
    %3 = tpu.matmul %1, %2, %cst {dimension_numbers = #tpu.dot_dimension_numbers<[1], [0], [0], [1], [0, 0, 1, 1], [], []>} : vector<8x32xbf16>, vector<32x128xbf16>, vector<8x128xf32> -> vector<8x128xf32>
    %4 = arith.truncf %3 : vector<8x128xf32> to vector<8x128xbf16>
    %c0_3 = arith.constant 0 : index
    %c0_4 = arith.constant 0 : index
    %5 = vector.load %arg3[%c0_3, %c0_4] : memref<1x128xbf16, #tpu.memory_space<vmem>>, vector<1x128xbf16>
    %6 = vector.broadcast %5 : vector<1x128xbf16> to vector<8x128xbf16>
    %7 = arith.addf %4, %6 : vector<8x128xbf16>
    %cst_5 = arith.constant 0.000000e+00 : bf16
    %8 = vector.broadcast %cst_5 : bf16 to vector<8x128xbf16>
    %9 = arith.maximumf %7, %8 : vector<8x128xbf16>
    %c0_6 = arith.constant 0 : index
    %c0_7 = arith.constant 0 : index
    %10 = vector.load %arg4[%c0_6, %c0_7] : memref<128x128xbf16, #tpu.memory_space<vmem>>, vector<128x128xbf16>
    %cst_8 = arith.constant dense<0.000000e+00> : vector<8x128xf32>
    %11 = tpu.matmul %9, %10, %cst_8 {dimension_numbers = #tpu.dot_dimension_numbers<[1], [0], [0], [1], [0, 0, 1, 1], [], []>} : vector<8x128xbf16>, vector<128x128xbf16>, vector<8x128xf32> -> vector<8x128xf32>
    %12 = arith.truncf %11 : vector<8x128xf32> to vector<8x128xbf16>
    %c0_9 = arith.constant 0 : index
    %c0_10 = arith.constant 0 : index
    %13 = vector.load %arg5[%c0_9, %c0_10] : memref<1x128xbf16, #tpu.memory_space<vmem>>, vector<1x128xbf16>
    %14 = vector.broadcast %13 : vector<1x128xbf16> to vector<8x128xbf16>
    %15 = arith.addf %12, %14 : vector<8x128xbf16>
    %cst_11 = arith.constant 0.000000e+00 : bf16
    %16 = vector.broadcast %cst_11 : bf16 to vector<8x128xbf16>
    %17 = arith.maximumf %15, %16 : vector<8x128xbf16>
    %c0_12 = arith.constant 0 : index
    %c0_13 = arith.constant 0 : index
    %18 = vector.load %arg6[%c0_12, %c0_13] : memref<128x128xbf16, #tpu.memory_space<vmem>>, vector<128x128xbf16>
    %cst_14 = arith.constant dense<0.000000e+00> : vector<8x128xf32>
    %19 = tpu.matmul %17, %18, %cst_14 {dimension_numbers = #tpu.dot_dimension_numbers<[1], [0], [0], [1], [0, 0, 1, 1], [], []>} : vector<8x128xbf16>, vector<128x128xbf16>, vector<8x128xf32> -> vector<8x128xf32>
    %c0_15 = arith.constant 0 : index
    %c0_16 = arith.constant 0 : index
    %20 = vector.load %arg7[%c0_15, %c0_16] : memref<1x128xf32, #tpu.memory_space<vmem>>, vector<1x128xf32>
    %21 = vector.broadcast %20 : vector<1x128xf32> to vector<8x128xf32>
    %22 = arith.addf %19, %21 : vector<8x128xf32>
    %23 = arith.truncf %22 : vector<8x128xf32> to vector<8x128xbf16>
    %c0_17 = arith.constant 0 : index
    %c0_18 = arith.constant 0 : index
    %24 = vector.load %arg8[%c0_17, %c0_18] : memref<8x128xbf16, #tpu.memory_space<vmem>>, vector<8x128xbf16>
    tpu.vector_store %arg8[%c0_17, %c0_18], %23 {strides = array<i32>} : memref<8x128xbf16, #tpu.memory_space<vmem>>, vector<8x128xbf16>,
    return
  }
  func.func @transform_0(%arg0: i32) -> (i32, i32) {
    %c0_i32 = arith.constant 0 : i32
    %c0_i32_0 = arith.constant 0 : i32
    return %arg0, %c0_i32 : i32, i32
  }
  func.func @transform_1(%arg0: i32) -> (i32, i32) {
    %c0_i32 = arith.constant 0 : i32
    %c0_i32_0 = arith.constant 0 : i32
    %c0_i32_1 = arith.constant 0 : i32
    return %c0_i32, %c0_i32_0 : i32, i32
  }
  func.func @transform_2(%arg0: i32) -> (i32, i32) {
    %c0_i32 = arith.constant 0 : i32
    %c0_i32_0 = arith.constant 0 : i32
    %c0_i32_1 = arith.constant 0 : i32
    return %c0_i32, %c0_i32_0 : i32, i32
  }
  func.func @transform_3(%arg0: i32) -> (i32, i32) {
    %c0_i32 = arith.constant 0 : i32
    %c0_i32_0 = arith.constant 0 : i32
    %c0_i32_1 = arith.constant 0 : i32
    return %c0_i32, %c0_i32_0 : i32, i32
  }
  func.func @transform_4(%arg0: i32) -> (i32, i32) {
    %c0_i32 = arith.constant 0 : i32
    %c0_i32_0 = arith.constant 0 : i32
    %c0_i32_1 = arith.constant 0 : i32
    return %c0_i32, %c0_i32_0 : i32, i32
  }
  func.func @transform_5(%arg0: i32) -> (i32, i32) {
    %c0_i32 = arith.constant 0 : i32
    %c0_i32_0 = arith.constant 0 : i32
    %c0_i32_1 = arith.constant 0 : i32
    return %c0_i32, %c0_i32_0 : i32, i32
  }
  func.func @transform_6(%arg0: i32) -> (i32, i32) {
    %c0_i32 = arith.constant 0 : i32
    %c0_i32_0 = arith.constant 0 : i32
    %c0_i32_1 = arith.constant 0 : i32
    return %c0_i32, %c0_i32_0 : i32, i32
  }
  func.func @transform_7(%arg0: i32) -> (i32, i32) {
    %c0_i32 = arith.constant 0 : i32
    %c0_i32_0 = arith.constant 0 : i32
    return %arg0, %c0_i32 : i32, i32
  }
}

module attributes {stable_mosaic.version = 11 : i64} {
  func.func @mlp_kernel(%arg0: i32, %arg1: memref<8x32xf32, #tpu.memory_space<vmem>>, %arg2: memref<32x128xbf16, #tpu.memory_space<vmem>>, %arg3: memref<1x128xbf16, #tpu.memory_space<vmem>>, %arg4: memref<128x128xbf16, #tpu.memory_space<vmem>>, %arg5: memref<1x128xbf16, #tpu.memory_space<vmem>>, %arg6: memref<128x128xbf16, #tpu.memory_space<vmem>>, %arg7: memref<1x128xf32, #tpu.memory_space<vmem>>, %arg8: memref<8x128xbf16, #tpu.memory_space<vmem>>) attributes {dimension_semantics = [#tpu.dimension_semantics<parallel>], iteration_bounds = array<i64: 1>, scalar_prefetch = 0 : i64, scratch_operands = 0 : i64, tpu.core_type = #tpu.core_type<tc>, window_params = [{transform_indices = @transform_0, window_bounds = array<i64: 8, 32>}, {pipeline_mode = #tpu.pipeline_mode<synchronous>, transform_indices = @transform_1, window_bounds = array<i64: 32, 128>}, {pipeline_mode = #tpu.pipeline_mode<synchronous>, transform_indices = @transform_2, window_bounds = array<i64: 1, 128>}, {pipeline_mode = #tpu.pipeline_mode<synchronous>, transform_indices = @transform_3, window_bounds = array<i64: 128, 128>}, {pipeline_mode = #tpu.pipeline_mode<synchronous>, transform_indices = @transform_4, window_bounds = array<i64: 1, 128>}, {pipeline_mode = #tpu.pipeline_mode<synchronous>, transform_indices = @transform_5, window_bounds = array<i64: 128, 128>}, {pipeline_mode = #tpu.pipeline_mode<synchronous>, transform_indices = @transform_6, window_bounds = array<i64: 1, 128>}, {transform_indices = @transform_7, window_bounds = array<i64: 8, 128>}]} {
    %c0 = arith.constant 0 : index
    %c0_0 = arith.constant 0 : index
    %0 = vector.load %arg1[%c0, %c0_0] : memref<8x32xf32, #tpu.memory_space<vmem>>, vector<8x32xf32>
    %1 = arith.truncf %0 : vector<8x32xf32> to vector<8x32xbf16>
    %c0_1 = arith.constant 0 : index
    %c0_2 = arith.constant 0 : index
    %2 = vector.load %arg2[%c0_1, %c0_2] : memref<32x128xbf16, #tpu.memory_space<vmem>>, vector<32x128xbf16>
    %cst = arith.constant dense<0.000000e+00> : vector<8x128xf32>
    %3 = tpu.matmul %1, %2, %cst {dimension_numbers = #tpu.dot_dimension_numbers<[1], [0], [0], [1], [0, 0, 1, 1], [], []>} : vector<8x32xbf16>, vector<32x128xbf16>, vector<8x128xf32> -> vector<8x128xf32>
    %4 = arith.truncf %3 : vector<8x128xf32> to vector<8x128xbf16>
    %c0_3 = arith.constant 0 : index
    %c0_4 = arith.constant 0 : index
    %5 = vector.load %arg3[%c0_3, %c0_4] : memref<1x128xbf16, #tpu.memory_space<vmem>>, vector<1x128xbf16>
    %6 = vector.broadcast %5 : vector<1x128xbf16> to vector<8x128xbf16>
    %7 = arith.addf %4, %6 : vector<8x128xbf16>
    %cst_5 = arith.constant 0.000000e+00 : bf16
    %8 = vector.broadcast %cst_5 : bf16 to vector<8x128xbf16>
    %9 = arith.maximumf %7, %8 : vector<8x128xbf16>
    %c0_6 = arith.constant 0 : index
    %c0_7 = arith.constant 0 : index
    %10 = vector.load %arg4[%c0_6, %c0_7] : memref<128x128xbf16, #tpu.memory_space<vmem>>, vector<128x128xbf16>
    %cst_8 = arith.constant dense<0.000000e+00> : vector<8x128xf32>
    %11 = tpu.matmul %9, %10, %cst_8 {dimension_numbers = #tpu.dot_dimension_numbers<[1], [0], [0], [1], [0, 0, 1, 1], [], []>} : vector<8x128xbf16>, vector<128x128xbf16>, vector<8x128xf32> -> vector<8x128xf32>
    %12 = arith.truncf %11 : vector<8x128xf32> to vector<8x128xbf16>
    %c0_9 = arith.constant 0 : index
    %c0_10 = arith.constant 0 : index
    %13 = vector.load %arg5[%c0_9, %c0_10] : memref<1x128xbf16, #tpu.memory_space<vmem>>, vector<1x128xbf16>
    %14 = vector.broadcast %13 : vector<1x128xbf16> to vector<8x128xbf16>
    %15 = arith.addf %12, %14 : vector<8x128xbf16>
    %cst_11 = arith.constant 0.000000e+00 : bf16
    %16 = vector.broadcast %cst_11 : bf16 to vector<8x128xbf16>
    %17 = arith.maximumf %15, %16 : vector<8x128xbf16>
    %c0_12 = arith.constant 0 : index
    %c0_13 = arith.constant 0 : index
    %18 = vector.load %arg6[%c0_12, %c0_13] : memref<128x128xbf16, #tpu.memory_space<vmem>>, vector<128x128xbf16>
    %cst_14 = arith.constant dense<0.000000e+00> : vector<8x128xf32>
    %19 = tpu.matmul %17, %18, %cst_14 {dimension_numbers = #tpu.dot_dimension_numbers<[1], [0], [0], [1], [0, 0, 1, 1], [], []>} : vector<8x128xbf16>, vector<128x128xbf16>, vector<8x128xf32> -> vector<8x128xf32>
    %c0_15 = arith.constant 0 : index
    %c0_16 = arith.constant 0 : index
    %20 = vector.load %arg7[%c0_15, %c0_16] : memref<1x128xf32, #tpu.memory_space<vmem>>, vector<1x128xf32>
    %21 = vector.broadcast %20 : vector<1x128xf32> to vector<8x128xf32>
    %22 = arith.addf %19, %21 : vector<8x128xf32>
    %23 = arith.truncf %22 : vector<8x128xf32> to vector<8x128xbf16>
    %c0_17 = arith.constant 0 : index
    %c0_18 = arith.constant 0 : index
    %24 = vector.load %arg8[%c0_17, %c0_18] : memref<8x128xbf16, #tpu.memory_space<vmem>>, vector<8x128xbf16>
    tpu.vector_store %arg8[%c0_17, %c0_18], %23 {strides = array<i32>} : memref<8x128xbf16, #tpu.memory_space<vmem>>, vector<8x128xbf16>,
    return
  }
  func.func @transform_0(%arg0: i32) -> (i32, i32) {
    %c0_i32 = arith.constant 0 : i32
    %c0_i32_0 = arith.constant 0 : i32
    return %arg0, %c0_i32 : i32, i32
  }
  func.func @transform_1(%arg0: i32) -> (i32, i32) {
    %c0_i32 = arith.constant 0 : i32
    %c0_i32_0 = arith.constant 0 : i32
    %c0_i32_1 = arith.constant 0 : i32
    return %c0_i32, %c0_i32_0 : i32, i32
  }
  func.func @transform_2(%arg0: i32) -> (i32, i32) {
    %c0_i32 = arith.constant 0 : i32
    %c0_i32_0 = arith.constant 0 : i32
    %c0_i32_1 = arith.constant 0 : i32
    return %c0_i32, %c0_i32_0 : i32, i32
  }
  func.func @transform_3(%arg0: i32) -> (i32, i32) {
    %c0_i32 = arith.constant 0 : i32
    %c0_i32_0 = arith.constant 0 : i32
    %c0_i32_1 = arith.constant 0 : i32
    return %c0_i32, %c0_i32_0 : i32, i32
  }
  func.func @transform_4(%arg0: i32) -> (i32, i32) {
    %c0_i32 = arith.constant 0 : i32
    %c0_i32_0 = arith.constant 0 : i32
    %c0_i32_1 = arith.constant 0 : i32
    return %c0_i32, %c0_i32_0 : i32, i32
  }
  func.func @transform_5(%arg0: i32) -> (i32, i32) {
    %c0_i32 = arith.constant 0 : i32
    %c0_i32_0 = arith.constant 0 : i32
    %c0_i32_1 = arith.constant 0 : i32
    return %c0_i32, %c0_i32_0 : i32, i32
  }
  func.func @transform_6(%arg0: i32) -> (i32, i32) {
    %c0_i32 = arith.constant 0 : i32
    %c0_i32_0 = arith.constant 0 : i32
    %c0_i32_1 = arith.constant 0 : i32
    return %c0_i32, %c0_i32_0 : i32, i32
  }
  func.func @transform_7(%arg0: i32) -> (i32, i32) {
    %c0_i32 = arith.constant 0 : i32
    %c0_i32_0 = arith.constant 0 : i32
    return %arg0, %c0_i32 : i32, i32
  }
}

</mosaic_0001>

<llo_original>
// kernel: tpu_custom_call.1
$region0: #{tpu_custom_call.1}
  #allocation0 [shape = 'u32[]', space=smem, size = 0x4, offset = 0x4, fixed_abs, tag = 'smem constant byte address 0x4 - core index']
  #allocation1 [shape = 'u32[144,128]{1,0:T(1,128)}', space=vmem, size = 0x12000, scoped, tag = 'internal scratch']
  %s0 = inlined_call_operand.hbm [shape: f32[8,32], index: 0, kind: input, shape index: {}]
  %s1 = inlined_call_operand.hbm [shape: bf16[32,128], index: 1, kind: input, shape index: {}]
  %s2 = inlined_call_operand.vmem [shape: bf16[1,128], index: 2, kind: input, shape index: {}]
  %s3 = inlined_call_operand.hbm [shape: bf16[128,128], index: 3, kind: input, shape index: {}]
  %s4 = inlined_call_operand.vmem [shape: bf16[1,128], index: 4, kind: input, shape index: {}]
  %s5 = inlined_call_operand.hbm [shape: bf16[128,128], index: 5, kind: input, shape index: {}]
  %s6 = inlined_call_operand.vmem [shape: f32[1,128], index: 6, kind: input, shape index: {}]
  %s7 = inlined_call_operand.hbm [shape: bf16[8,128], index: 7, kind: output, shape index: {}]
  %s8 = sld [smem:[#allocation0]]
  $region54: #{tpu_custom_call.1} parent=0
    _
  %s10 = ssub.s32 1, %s8
  %s11 = scalar_select 0, %s10, %s8
  $region1: #{tpu_custom_call.1} parent=0
    #allocation2 [shape = 'u8[4096]{0}', space=vmem, size = 0x1000, scoped, tag = 'input window, operand 0, single buffered']
    #allocation3 [shape = 's32[1]{0}', space=sflag, size = 0x4, scoped, tag = 'scoped memory for tpu_custom_call.1']
    #allocation4 [shape = 's32[1]{0}', space=sflag, size = 0x4, scoped, tag = 'scoped memory for tpu_custom_call.1']
    #allocation5 [shape = 'u8[8192]{0}', space=vmem, size = 0x2000, scoped, tag = 'input window, operand 1, single buffered']
    #allocation6 [shape = 's32[1]{0}', space=sflag, size = 0x4, scoped, tag = 'scoped memory for tpu_custom_call.1']
    #allocation7 [shape = 'u8[32768]{0}', space=vmem, size = 0x8000, scoped, tag = 'input window, operand 3, single buffered']
    #allocation8 [shape = 'u8[32768]{0}', space=vmem, size = 0x8000, scoped, tag = 'input window, operand 5, single buffered']
    #allocation9 [shape = 's32[1]{0}', space=sflag, size = 0x4, scoped, tag = 'scoped memory for tpu_custom_call.1']
    #allocation10 [shape = 'u8[2048]{0}', space=vmem, size = 0x800, scoped, tag = 'output window, operand 0, single buffered']
    %12 = vsyncpa [#allocation3], 0
    %13 = vsyncpa [#allocation6], 0
    %14 = vsyncpa [#allocation9], 0
    %15 = vsyncpa [#allocation4], 0
    // Predicated region
    $region2: #{tpu_custom_call.1} parent=1 // pred_check
      _
    $region3: #{tpu_custom_call.1} parent=1 // pred_check_branch
      %17 = sbr.rel (0) target = $region5
    $region4: #{tpu_custom_call.1} parent=1 // pred_region
      %s19 = ssub.s32 128, 128
      %20 = vsyncadd [#allocation3], %s19
      %s22 = sshll.u32 [#allocation2], 4
      %s23 = int_to_ptr.vmem [resolvable:$true] %s22
      %25 = dma.hbm_to_vmem [thread:$0]  %s0, 128, %s23, [#allocation3]
    $region5: #{tpu_custom_call.1} parent=1 // pred_fallthru
      _
    // Predicated region
    $region6: #{tpu_custom_call.1} parent=1 // pred_check
      _
    $region7: #{tpu_custom_call.1} parent=1 // pred_check_branch
      %27 = sbr.rel (0) target = $region9
    $region8: #{tpu_custom_call.1} parent=1 // pred_region
      %s29 = ssub.s32 256, 256
      %30 = vsyncadd [#allocation6], %s29
      %s31 = sshll.u32 [#allocation5], 4
      %s32 = int_to_ptr.vmem [resolvable:$true] %s31
      %37 = dma.hbm_to_vmem [thread:$0]  %s1, 256, %s32, [#allocation6], 64, 64, 4
    $region9: #{tpu_custom_call.1} parent=1 // pred_fallthru
      _
    // Predicated region
    $region10: #{tpu_custom_call.1} parent=1 // pred_check
      _
    $region11: #{tpu_custom_call.1} parent=1 // pred_check_branch
      %39 = sbr.rel (0) target = $region13
    $region12: #{tpu_custom_call.1} parent=1 // pred_region
      _
    $region13: #{tpu_custom_call.1} parent=1 // pred_fallthru
      _
    // Predicated region
    $region14: #{tpu_custom_call.1} parent=1 // pred_check
      _
    $region15: #{tpu_custom_call.1} parent=1 // pred_check_branch
      %41 = sbr.rel (0) target = $region17
    $region16: #{tpu_custom_call.1} parent=1 // pred_region
      %s43 = ssub.s32 1024, 1024
      %44 = vsyncadd [#allocation6], %s43
      %s45 = sshll.u32 [#allocation7], 4
      %s46 = int_to_ptr.vmem [resolvable:$true] %s45
      %51 = dma.hbm_to_vmem [thread:$0]  %s3, 1024, %s46, [#allocation6], 64, 64, 4
    $region17: #{tpu_custom_call.1} parent=1 // pred_fallthru
      _
    // Predicated region
    $region18: #{tpu_custom_call.1} parent=1 // pred_check
      _
    $region19: #{tpu_custom_call.1} parent=1 // pred_check_branch
      %53 = sbr.rel (0) target = $region21
    $region20: #{tpu_custom_call.1} parent=1 // pred_region
      _
    $region21: #{tpu_custom_call.1} parent=1 // pred_fallthru
      _
    // Predicated region
    $region22: #{tpu_custom_call.1} parent=1 // pred_check
      _
    $region23: #{tpu_custom_call.1} parent=1 // pred_check_branch
      %55 = sbr.rel (0) target = $region25
    $region24: #{tpu_custom_call.1} parent=1 // pred_region
      %s57 = ssub.s32 1024, 1024
      %58 = vsyncadd [#allocation9], %s57
      %s59 = sshll.u32 [#allocation8], 4
      %s60 = int_to_ptr.vmem [resolvable:$true] %s59
      %65 = dma.hbm_to_vmem [thread:$0]  %s5, 1024, %s60, [#allocation9], 64, 64, 4
    $region25: #{tpu_custom_call.1} parent=1 // pred_fallthru
      _
    // Predicated region
    $region26: #{tpu_custom_call.1} parent=1 // pred_check
      _
    $region27: #{tpu_custom_call.1} parent=1 // pred_check_branch
      %67 = sbr.rel (0) target = $region29
    $region28: #{tpu_custom_call.1} parent=1 // pred_region
      _
    $region29: #{tpu_custom_call.1} parent=1 // pred_fallthru
      _
    // Predicated region
    $region30: #{tpu_custom_call.1} parent=1 // pred_check
      _
    $region31: #{tpu_custom_call.1} parent=1 // pred_check_branch
      %69 = sbr.rel (0) target = $region33
    $region32: #{tpu_custom_call.1} parent=1 // pred_region
      %70 = dma.done [#allocation3], 128
    $region33: #{tpu_custom_call.1} parent=1 // pred_fallthru
      _
    // Predicated region
    $region34: #{tpu_custom_call.1} parent=1 // pred_check
      _
    $region35: #{tpu_custom_call.1} parent=1 // pred_check_branch
      %72 = sbr.rel (0) target = $region37
    $region36: #{tpu_custom_call.1} parent=1 // pred_region
      %73 = dma.done [#allocation6], 256
    $region37: #{tpu_custom_call.1} parent=1 // pred_fallthru
      _
    // Predicated region
    $region38: #{tpu_custom_call.1} parent=1 // pred_check
      _
    $region39: #{tpu_custom_call.1} parent=1 // pred_check_branch
      %75 = sbr.rel (0) target = $region41
    $region40: #{tpu_custom_call.1} parent=1 // pred_region
      %76 = dma.done [#allocation6], 1024
    $region41: #{tpu_custom_call.1} parent=1 // pred_fallthru
      _
    // Predicated region
    $region42: #{tpu_custom_call.1} parent=1 // pred_check
      _
    $region43: #{tpu_custom_call.1} parent=1 // pred_check_branch
      %78 = sbr.rel (0) target = $region45
    $region44: #{tpu_custom_call.1} parent=1 // pred_region
      %79 = dma.done [#allocation9], 1024
    $region45: #{tpu_custom_call.1} parent=1 // pred_fallthru
      _
    %v81 = vld [vmem:[#allocation2] sm:$0xff]
    %v82 = vpack.c.bf16 %v81, %v81
    %v83 = vld [vmem:[#allocation5] sm:$0xf]
    %v84 = vld [vmem:[#allocation5 + $0x4] sm:$0xf]
    %v85 = vld [vmem:[#allocation5 + $0x8] sm:$0xf]
    %v86 = vld [vmem:[#allocation5 + $0xc] sm:$0xf]
    %v91 = vunpack.c.l.b16 %v83
    %v92 = vunpack.c.l.b16 %v84
    %v93 = vunpack.c.l.b16 %v85
    %v94 = vunpack.c.l.b16 %v86
    %v95 = vpack.c.b16 %v92, %v91
    %v96 = vpack.c.b16 %v94, %v93
    %vm99 = vcmask 261120
    %v101 = vsel %vm99, %v82, 0
    %103 = vmatprep.subr.bf16.mxu0 0
    %104 = vmatpush1.bf16.msra.mxu0 %v95
    %105 = vmatprep.subr.bf16.mxu0 0
    %106 = vmatpush1.bf16.msra.mxu0 %v96
    %107 = vmatprep.subr.bf16.mxu0 0
    %108 = vmatpush1.bf16.msra.mxu0 0
    %109 = vmatprep.subr.bf16.mxu0 0
    %110 = vmatpush1.bf16.msra.mxu0 0
    %111 = vmatprep.subr.bf16.mxu0 0
    %112 = vmatpush1.bf16.msra.mxu0 0
    %113 = vmatprep.subr.bf16.mxu0 0
    %114 = vmatpush1.bf16.msra.mxu0 0
    %115 = vmatprep.subr.bf16.mxu0 0
    %116 = vmatpush1.bf16.msra.mxu0 0
    %117 = vmatprep.subr.bf16.mxu0 0
    %118 = vmatpush1.bf16.msra.mxu0 0
    %119 = vmatprep.subr.bf16.mxu0 0
    %120 = vmatpush1.bf16.msra.mxu0 0
    %121 = vmatprep.subr.bf16.mxu0 0
    %122 = vmatpush1.bf16.msra.mxu0 0
    %123 = vmatprep.subr.bf16.mxu0 0
    %124 = vmatpush1.bf16.msra.mxu0 0
    %125 = vmatprep.subr.bf16.mxu0 0
    %126 = vmatpush1.bf16.msra.mxu0 0
    %127 = vmatprep.subr.bf16.mxu0 0
    %128 = vmatpush1.bf16.msra.mxu0 0
    %129 = vmatprep.subr.bf16.mxu0 0
    %130 = vmatpush1.bf16.msra.mxu0 0
    %131 = vmatprep.subr.bf16.mxu0 0
    %132 = vmatpush1.bf16.msra.mxu0 0
    %133 = vmatprep.subr.bf16.mxu0 0
    %134 = vmatpush1.bf16.msra.mxu0 0
    %135 = vmatprep.mubr.bf16.mxu0 0
    %136 = vmatmul.mubr.bf16.gmra.mrb[0].mxu0 %v101
    %v137 = vpop.f32.mrb[0].mxu0
    %v138 = vadd.f32 0.0, %v137
    %v139 = vpop.f32.mrb[0].mxu0
    %v140 = vpop.f32.mrb[0].mxu0
    %v141 = vpop.f32.mrb[0].mxu0
    %142 = vdwg.mxu0
    %v143 = vpack.c.bf16 %v138, %v138
    %v144 = vld [vmem:[%s2] sm:$0x1]
    %v146 = vpack.i.b16 %v144, %v144
    %v148 = vlaneseq
    %v149 = vshrl.u32 %v148, 7
    %v150 = vsub.s32 0, %v149
    %v151 = vrot.slane %v146, %v150
    %v152 = vadd.bf16 %v143, %v151
    %v153 = vmax.bf16 %v152, 0
    %v154 = vld [vmem:[#allocation7] sm:$0xf]
    %v155 = vld [vmem:[#allocation7 + $0x4] sm:$0xf]
    %v156 = vld [vmem:[#allocation7 + $0x8] sm:$0xf]
    %v157 = vld [vmem:[#allocation7 + $0xc] sm:$0xf]
    %v158 = vld [vmem:[#allocation7 + $0x10] sm:$0xf]
    %v159 = vld [vmem:[#allocation7 + $0x14] sm:$0xf]
    %v160 = vld [vmem:[#allocation7 + $0x18] sm:$0xf]
    %v161 = vld [vmem:[#allocation7 + $0x1c] sm:$0xf]
    %v162 = vld [vmem:[#allocation7 + $0x20] sm:$0xf]
    %v163 = vld [vmem:[#allocation7 + $0x24] sm:$0xf]
    %v164 = vld [vmem:[#allocation7 + $0x28] sm:$0xf]
    %v165 = vld [vmem:[#allocation7 + $0x2c] sm:$0xf]
    %v166 = vld [vmem:[#allocation7 + $0x30] sm:$0xf]
    %v167 = vld [vmem:[#allocation7 + $0x34] sm:$0xf]
    %v168 = vld [vmem:[#allocation7 + $0x38] sm:$0xf]
    %v169 = vld [vmem:[#allocation7 + $0x3c] sm:$0xf]
    %v186 = vunpack.c.l.b16 %v154
    %v187 = vunpack.c.l.b16 %v155
    %v188 = vunpack.c.l.b16 %v156
    %v189 = vunpack.c.l.b16 %v157
    %v190 = vunpack.c.l.b16 %v158
    %v191 = vunpack.c.l.b16 %v159
    %v192 = vunpack.c.l.b16 %v160
    %v193 = vunpack.c.l.b16 %v161
    %v194 = vunpack.c.l.b16 %v162
    %v195 = vunpack.c.l.b16 %v163
    %v196 = vunpack.c.l.b16 %v164
    %v197 = vunpack.c.l.b16 %v165
    %v198 = vunpack.c.l.b16 %v166
    %v199 = vunpack.c.l.b16 %v167
    %v200 = vunpack.c.l.b16 %v168
    %v201 = vunpack.c.l.b16 %v169
    %v202 = vpack.c.b16 %v187, %v186
    %v203 = vpack.c.b16 %v189, %v188
    %v204 = vpack.c.b16 %v191, %v190
    %v205 = vpack.c.b16 %v193, %v192
    %v206 = vpack.c.b16 %v195, %v194
    %v207 = vpack.c.b16 %v197, %v196
    %v208 = vpack.c.b16 %v199, %v198
    %v209 = vpack.c.b16 %v201, %v200
    %218 = vmatprep.subr.bf16.mxu0 0
    %219 = vmatpush1.bf16.msra.mxu0 %v202
    %220 = vmatprep.subr.bf16.mxu0 0
    %221 = vmatpush1.bf16.msra.mxu0 %v203
    %222 = vmatprep.subr.bf16.mxu0 0
    %223 = vmatpush1.bf16.msra.mxu0 %v204
    %224 = vmatprep.subr.bf16.mxu0 0
    %225 = vmatpush1.bf16.msra.mxu0 %v205
    %226 = vmatprep.subr.bf16.mxu0 0
    %227 = vmatpush1.bf16.msra.mxu0 %v206
    %228 = vmatprep.subr.bf16.mxu0 0
    %229 = vmatpush1.bf16.msra.mxu0 %v207
    %230 = vmatprep.subr.bf16.mxu0 0
    %231 = vmatpush1.bf16.msra.mxu0 %v208
    %232 = vmatprep.subr.bf16.mxu0 0
    %233 = vmatpush1.bf16.msra.mxu0 %v209
    %234 = vmatprep.subr.bf16.mxu0 0
    %235 = vmatpush1.bf16.msra.mxu0 0
    %236 = vmatprep.subr.bf16.mxu0 0
    %237 = vmatpush1.bf16.msra.mxu0 0
    %238 = vmatprep.subr.bf16.mxu0 0
    %239 = vmatpush1.bf16.msra.mxu0 0
    %240 = vmatprep.subr.bf16.mxu0 0
    %241 = vmatpush1.bf16.msra.mxu0 0
    %242 = vmatprep.subr.bf16.mxu0 0
    %243 = vmatpush1.bf16.msra.mxu0 0
    %244 = vmatprep.subr.bf16.mxu0 0
    %245 = vmatpush1.bf16.msra.mxu0 0
    %246 = vmatprep.subr.bf16.mxu0 0
    %247 = vmatpush1.bf16.msra.mxu0 0
    %248 = vmatprep.subr.bf16.mxu0 0
    %249 = vmatpush1.bf16.msra.mxu0 0
    %250 = vmatprep.mubr.bf16.mxu0 0
    %251 = vmatmul.mubr.bf16.gmra.mrb[0].mxu0 %v153
    %v252 = vpop.f32.mrb[0].mxu0
    %v253 = vadd.f32 0.0, %v252
    %v254 = vpop.f32.mrb[0].mxu0
    %v255 = vpop.f32.mrb[0].mxu0
    %v256 = vpop.f32.mrb[0].mxu0
    %257 = vdwg.mxu0
    %v258 = vpack.c.bf16 %v253, %v253
    %v259 = vld [vmem:[%s4] sm:$0x1]
    %v261 = vpack.i.b16 %v259, %v259
    %v263 = vlaneseq
    %v264 = vshrl.u32 %v263, 7
    %v265 = vsub.s32 0, %v264
    %v266 = vrot.slane %v261, %v265
    %v267 = vadd.bf16 %v258, %v266
    %v268 = vmax.bf16 %v267, 0
    %v269 = vld [vmem:[#allocation8] sm:$0xf]
    %v270 = vld [vmem:[#allocation8 + $0x4] sm:$0xf]
    %v271 = vld [vmem:[#allocation8 + $0x8] sm:$0xf]
    %v272 = vld [vmem:[#allocation8 + $0xc] sm:$0xf]
    %v273 = vld [vmem:[#allocation8 + $0x10] sm:$0xf]
    %v274 = vld [vmem:[#allocation8 + $0x14] sm:$0xf]
    %v275 = vld [vmem:[#allocation8 + $0x18] sm:$0xf]
    %v276 = vld [vmem:[#allocation8 + $0x1c] sm:$0xf]
    %v277 = vld [vmem:[#allocation8 + $0x20] sm:$0xf]
    %v278 = vld [vmem:[#allocation8 + $0x24] sm:$0xf]
    %v279 = vld [vmem:[#allocation8 + $0x28] sm:$0xf]
    %v280 = vld [vmem:[#allocation8 + $0x2c] sm:$0xf]
    %v281 = vld [vmem:[#allocation8 + $0x30] sm:$0xf]
    %v282 = vld [vmem:[#allocation8 + $0x34] sm:$0xf]
    %v283 = vld [vmem:[#allocation8 + $0x38] sm:$0xf]
    %v284 = vld [vmem:[#allocation8 + $0x3c] sm:$0xf]
    %v285 = vld [vmem:[%s6] sm:$0x1]
    %v287 = vlaneseq
    %v288 = vshrl.u32 %v287, 7
    %v289 = vsub.s32 0, %v288
    %v290 = vrot.slane %v285, %v289
    %v308 = vunpack.c.l.b16 %v269
    %v309 = vunpack.c.l.b16 %v270
    %v310 = vunpack.c.l.b16 %v271
    %v311 = vunpack.c.l.b16 %v272
    %v312 = vunpack.c.l.b16 %v273
    %v313 = vunpack.c.l.b16 %v274
    %v314 = vunpack.c.l.b16 %v275
    %v315 = vunpack.c.l.b16 %v276
    %v316 = vunpack.c.l.b16 %v277
    %v317 = vunpack.c.l.b16 %v278
    %v318 = vunpack.c.l.b16 %v279
    %v319 = vunpack.c.l.b16 %v280
    %v320 = vunpack.c.l.b16 %v281
    %v321 = vunpack.c.l.b16 %v282
    %v322 = vunpack.c.l.b16 %v283
    %v323 = vunpack.c.l.b16 %v284
    %v324 = vpack.c.b16 %v309, %v308
    %v325 = vpack.c.b16 %v311, %v310
    %v326 = vpack.c.b16 %v313, %v312
    %v327 = vpack.c.b16 %v315, %v314
    %v328 = vpack.c.b16 %v317, %v316
    %v329 = vpack.c.b16 %v319, %v318
    %v330 = vpack.c.b16 %v321, %v320
    %v331 = vpack.c.b16 %v323, %v322
    %340 = vmatprep.subr.bf16.mxu0 0
    %341 = vmatpush1.bf16.msra.mxu0 %v324
    %342 = vmatprep.subr.bf16.mxu0 0
    %343 = vmatpush1.bf16.msra.mxu0 %v325
    %344 = vmatprep.subr.bf16.mxu0 0
    %345 = vmatpush1.bf16.msra.mxu0 %v326
    %346 = vmatprep.subr.bf16.mxu0 0
    %347 = vmatpush1.bf16.msra.mxu0 %v327
    %348 = vmatprep.subr.bf16.mxu0 0
    %349 = vmatpush1.bf16.msra.mxu0 %v328
    %350 = vmatprep.subr.bf16.mxu0 0
    %351 = vmatpush1.bf16.msra.mxu0 %v329
    %352 = vmatprep.subr.bf16.mxu0 0
    %353 = vmatpush1.bf16.msra.mxu0 %v330
    %354 = vmatprep.subr.bf16.mxu0 0
    %355 = vmatpush1.bf16.msra.mxu0 %v331
    %356 = vmatprep.subr.bf16.mxu0 0
    %357 = vmatpush1.bf16.msra.mxu0 0
    %358 = vmatprep.subr.bf16.mxu0 0
    %359 = vmatpush1.bf16.msra.mxu0 0
    %360 = vmatprep.subr.bf16.mxu0 0
    %361 = vmatpush1.bf16.msra.mxu0 0
    %362 = vmatprep.subr.bf16.mxu0 0
    %363 = vmatpush1.bf16.msra.mxu0 0
    %364 = vmatprep.subr.bf16.mxu0 0
    %365 = vmatpush1.bf16.msra.mxu0 0
    %366 = vmatprep.subr.bf16.mxu0 0
    %367 = vmatpush1.bf16.msra.mxu0 0
    %368 = vmatprep.subr.bf16.mxu0 0
    %369 = vmatpush1.bf16.msra.mxu0 0
    %370 = vmatprep.subr.bf16.mxu0 0
    %371 = vmatpush1.bf16.msra.mxu0 0
    %372 = vmatprep.mubr.bf16.mxu0 0
    %373 = vmatmul.mubr.bf16.gmra.mrb[0].mxu0 %v268
    %v374 = vpop.f32.mrb[0].mxu0
    %v375 = vadd.f32 %v290, %v374
    %v376 = vpop.f32.mrb[0].mxu0
    %v377 = vpop.f32.mrb[0].mxu0
    %v378 = vpop.f32.mrb[0].mxu0
    %379 = vdwg.mxu0
    %v380 = vpack.c.bf16 %v375, %v375
    %381 = vst [vmem:[#allocation10] sm:$0xf] %v380
    // Predicated region
    $region46: #{tpu_custom_call.1} parent=1 // pred_check
      _
    $region47: #{tpu_custom_call.1} parent=1 // pred_check_branch
      %383 = sbr.rel (0) target = $region49
    $region48: #{tpu_custom_call.1} parent=1 // pred_region
      %s385 = ssub.s32 64, 64
      %386 = vsyncadd [#allocation4], %s385
      %s388 = sshll.u32 [#allocation10], 4
      %s389 = int_to_ptr.vmem [resolvable:$true] %s388
      %391 = dma.vmem_to_hbm [thread:$0]  %s389, 64, %s7, [#allocation4]
    $region49: #{tpu_custom_call.1} parent=1 // pred_fallthru
      _
    // Predicated region
    $region50: #{tpu_custom_call.1} parent=1 // pred_check
      _
    $region51: #{tpu_custom_call.1} parent=1 // pred_check_branch
      %393 = sbr.rel (0) target = $region53
    $region52: #{tpu_custom_call.1} parent=1 // pred_region
      %394 = dma.done [#allocation4], 64
    $region53: #{tpu_custom_call.1} parent=1 // pred_fallthru
      _
    %395 = vsyncpa [#allocation3], 1
    %396 = vsyncpa [#allocation6], 1
    %397 = vsyncpa [#allocation9], 1
    %398 = vsyncpa [#allocation4], 1

// kernel: tpu_custom_call.1
$region0: #{tpu_custom_call.1}
  #allocation0 [shape = 'u32[]', space=smem, size = 0x4, offset = 0x4, fixed_abs, tag = 'smem constant byte address 0x4 - core index']
  #allocation1 [shape = 'u32[144,128]{1,0:T(1,128)}', space=vmem, size = 0x12000, scoped, tag = 'internal scratch']
  %s0 = inlined_call_operand.hbm [shape: f32[8,32], index: 0, kind: input, shape index: {}]
  %s1 = inlined_call_operand.hbm [shape: bf16[32,128], index: 1, kind: input, shape index: {}]
  %s2 = inlined_call_operand.vmem [shape: bf16[1,128], index: 2, kind: input, shape index: {}]
  %s3 = inlined_call_operand.hbm [shape: bf16[128,128], index: 3, kind: input, shape index: {}]
  %s4 = inlined_call_operand.vmem [shape: bf16[1,128], index: 4, kind: input, shape index: {}]
  %s5 = inlined_call_operand.hbm [shape: bf16[128,128], index: 5, kind: input, shape index: {}]
  %s6 = inlined_call_operand.vmem [shape: f32[1,128], index: 6, kind: input, shape index: {}]
  %s7 = inlined_call_operand.hbm [shape: bf16[8,128], index: 7, kind: output, shape index: {}]
  %s8 = sld [smem:[#allocation0]]
  $region54: #{tpu_custom_call.1} parent=0
    _
  %s10 = ssub.s32 1, %s8
  %s11 = scalar_select 0, %s10, %s8
  $region1: #{tpu_custom_call.1} parent=0
    #allocation2 [shape = 'u8[4096]{0}', space=vmem, size = 0x1000, scoped, tag = 'input window, operand 0, single buffered']
    #allocation3 [shape = 's32[1]{0}', space=sflag, size = 0x4, scoped, tag = 'scoped memory for tpu_custom_call.1']
    #allocation4 [shape = 's32[1]{0}', space=sflag, size = 0x4, scoped, tag = 'scoped memory for tpu_custom_call.1']
    #allocation5 [shape = 'u8[8192]{0}', space=vmem, size = 0x2000, scoped, tag = 'input window, operand 1, single buffered']
    #allocation6 [shape = 's32[1]{0}', space=sflag, size = 0x4, scoped, tag = 'scoped memory for tpu_custom_call.1']
    #allocation7 [shape = 'u8[32768]{0}', space=vmem, size = 0x8000, scoped, tag = 'input window, operand 3, single buffered']
    #allocation8 [shape = 'u8[32768]{0}', space=vmem, size = 0x8000, scoped, tag = 'input window, operand 5, single buffered']
    #allocation9 [shape = 's32[1]{0}', space=sflag, size = 0x4, scoped, tag = 'scoped memory for tpu_custom_call.1']
    #allocation10 [shape = 'u8[2048]{0}', space=vmem, size = 0x800, scoped, tag = 'output window, operand 0, single buffered']
    %12 = vsyncpa [#allocation3], 0
    %13 = vsyncpa [#allocation6], 0
    %14 = vsyncpa [#allocation9], 0
    %15 = vsyncpa [#allocation4], 0
    // Predicated region
    $region2: #{tpu_custom_call.1} parent=1 // pred_check
      _
    $region3: #{tpu_custom_call.1} parent=1 // pred_check_branch
      %17 = sbr.rel (0) target = $region5
    $region4: #{tpu_custom_call.1} parent=1 // pred_region
      %s19 = ssub.s32 128, 128
      %20 = vsyncadd [#allocation3], %s19
      %s22 = sshll.u32 [#allocation2], 4
      %s23 = int_to_ptr.vmem [resolvable:$true] %s22
      %25 = dma.hbm_to_vmem [thread:$0]  %s0, 128, %s23, [#allocation3]
    $region5: #{tpu_custom_call.1} parent=1 // pred_fallthru
      _
    // Predicated region
    $region6: #{tpu_custom_call.1} parent=1 // pred_check
      _
    $region7: #{tpu_custom_call.1} parent=1 // pred_check_branch
      %27 = sbr.rel (0) target = $region9
    $region8: #{tpu_custom_call.1} parent=1 // pred_region
      %s29 = ssub.s32 256, 256
      %30 = vsyncadd [#allocation6], %s29
      %s31 = sshll.u32 [#allocation5], 4
      %s32 = int_to_ptr.vmem [resolvable:$true] %s31
      %37 = dma.hbm_to_vmem [thread:$0]  %s1, 256, %s32, [#allocation6], 64, 64, 4
    $region9: #{tpu_custom_call.1} parent=1 // pred_fallthru
      _
    // Predicated region
    $region10: #{tpu_custom_call.1} parent=1 // pred_check
      _
    $region11: #{tpu_custom_call.1} parent=1 // pred_check_branch
      %39 = sbr.rel (0) target = $region13
    $region12: #{tpu_custom_call.1} parent=1 // pred_region
      _
    $region13: #{tpu_custom_call.1} parent=1 // pred_fallthru
      _
    // Predicated region
    $region14: #{tpu_custom_call.1} parent=1 // pred_check
      _
    $region15: #{tpu_custom_call.1} parent=1 // pred_check_branch
      %41 = sbr.rel (0) target = $region17
    $region16: #{tpu_custom_call.1} parent=1 // pred_region
      %s43 = ssub.s32 1024, 1024
      %44 = vsyncadd [#allocation6], %s43
      %s45 = sshll.u32 [#allocation7], 4
      %s46 = int_to_ptr.vmem [resolvable:$true] %s45
      %51 = dma.hbm_to_vmem [thread:$0]  %s3, 1024, %s46, [#allocation6], 64, 64, 4
    $region17: #{tpu_custom_call.1} parent=1 // pred_fallthru
      _
    // Predicated region
    $region18: #{tpu_custom_call.1} parent=1 // pred_check
      _
    $region19: #{tpu_custom_call.1} parent=1 // pred_check_branch
      %53 = sbr.rel (0) target = $region21
    $region20: #{tpu_custom_call.1} parent=1 // pred_region
      _
    $region21: #{tpu_custom_call.1} parent=1 // pred_fallthru
      _
    // Predicated region
    $region22: #{tpu_custom_call.1} parent=1 // pred_check
      _
    $region23: #{tpu_custom_call.1} parent=1 // pred_check_branch
      %55 = sbr.rel (0) target = $region25
    $region24: #{tpu_custom_call.1} parent=1 // pred_region
      %s57 = ssub.s32 1024, 1024
      %58 = vsyncadd [#allocation9], %s57
      %s59 = sshll.u32 [#allocation8], 4
      %s60 = int_to_ptr.vmem [resolvable:$true] %s59
      %65 = dma.hbm_to_vmem [thread:$0]  %s5, 1024, %s60, [#allocation9], 64, 64, 4
    $region25: #{tpu_custom_call.1} parent=1 // pred_fallthru
      _
    // Predicated region
    $region26: #{tpu_custom_call.1} parent=1 // pred_check
      _
    $region27: #{tpu_custom_call.1} parent=1 // pred_check_branch
      %67 = sbr.rel (0) target = $region29
    $region28: #{tpu_custom_call.1} parent=1 // pred_region
      _
    $region29: #{tpu_custom_call.1} parent=1 // pred_fallthru
      _
    // Predicated region
    $region30: #{tpu_custom_call.1} parent=1 // pred_check
      _
    $region31: #{tpu_custom_call.1} parent=1 // pred_check_branch
      %69 = sbr.rel (0) target = $region33
    $region32: #{tpu_custom_call.1} parent=1 // pred_region
      %70 = dma.done [#allocation3], 128
    $region33: #{tpu_custom_call.1} parent=1 // pred_fallthru
      _
    // Predicated region
    $region34: #{tpu_custom_call.1} parent=1 // pred_check
      _
    $region35: #{tpu_custom_call.1} parent=1 // pred_check_branch
      %72 = sbr.rel (0) target = $region37
    $region36: #{tpu_custom_call.1} parent=1 // pred_region
      %73 = dma.done [#allocation6], 256
    $region37: #{tpu_custom_call.1} parent=1 // pred_fallthru
      _
    // Predicated region
    $region38: #{tpu_custom_call.1} parent=1 // pred_check
      _
    $region39: #{tpu_custom_call.1} parent=1 // pred_check_branch
      %75 = sbr.rel (0) target = $region41
    $region40: #{tpu_custom_call.1} parent=1 // pred_region
      %76 = dma.done [#allocation6], 1024
    $region41: #{tpu_custom_call.1} parent=1 // pred_fallthru
      _
    // Predicated region
    $region42: #{tpu_custom_call.1} parent=1 // pred_check
      _
    $region43: #{tpu_custom_call.1} parent=1 // pred_check_branch
      %78 = sbr.rel (0) target = $region45
    $region44: #{tpu_custom_call.1} parent=1 // pred_region
      %79 = dma.done [#allocation9], 1024
    $region45: #{tpu_custom_call.1} parent=1 // pred_fallthru
      _
    %v81 = vld [vmem:[#allocation2] sm:$0xff]
    %v82 = vpack.c.bf16 %v81, %v81
    %v83 = vld [vmem:[#allocation5] sm:$0xf]
    %v84 = vld [vmem:[#allocation5 + $0x4] sm:$0xf]
    %v85 = vld [vmem:[#allocation5 + $0x8] sm:$0xf]
    %v86 = vld [vmem:[#allocation5 + $0xc] sm:$0xf]
    %v91 = vunpack.c.l.b16 %v83
    %v92 = vunpack.c.l.b16 %v84
    %v93 = vunpack.c.l.b16 %v85
    %v94 = vunpack.c.l.b16 %v86
    %v95 = vpack.c.b16 %v92, %v91
    %v96 = vpack.c.b16 %v94, %v93
    %vm99 = vcmask 261120
    %v101 = vsel %vm99, %v82, 0
    %103 = vmatprep.subr.bf16.mxu0 0
    %104 = vmatpush1.bf16.msra.mxu0 %v95
    %105 = vmatprep.subr.bf16.mxu0 0
    %106 = vmatpush1.bf16.msra.mxu0 %v96
    %107 = vmatprep.subr.bf16.mxu0 0
    %108 = vmatpush1.bf16.msra.mxu0 0
    %109 = vmatprep.subr.bf16.mxu0 0
    %110 = vmatpush1.bf16.msra.mxu0 0
    %111 = vmatprep.subr.bf16.mxu0 0
    %112 = vmatpush1.bf16.msra.mxu0 0
    %113 = vmatprep.subr.bf16.mxu0 0
    %114 = vmatpush1.bf16.msra.mxu0 0
    %115 = vmatprep.subr.bf16.mxu0 0
    %116 = vmatpush1.bf16.msra.mxu0 0
    %117 = vmatprep.subr.bf16.mxu0 0
    %118 = vmatpush1.bf16.msra.mxu0 0
    %119 = vmatprep.subr.bf16.mxu0 0
    %120 = vmatpush1.bf16.msra.mxu0 0
    %121 = vmatprep.subr.bf16.mxu0 0
    %122 = vmatpush1.bf16.msra.mxu0 0
    %123 = vmatprep.subr.bf16.mxu0 0
    %124 = vmatpush1.bf16.msra.mxu0 0
    %125 = vmatprep.subr.bf16.mxu0 0
    %126 = vmatpush1.bf16.msra.mxu0 0
    %127 = vmatprep.subr.bf16.mxu0 0
    %128 = vmatpush1.bf16.msra.mxu0 0
    %129 = vmatprep.subr.bf16.mxu0 0
    %130 = vmatpush1.bf16.msra.mxu0 0
    %131 = vmatprep.subr.bf16.mxu0 0
    %132 = vmatpush1.bf16.msra.mxu0 0
    %133 = vmatprep.subr.bf16.mxu0 0
    %134 = vmatpush1.bf16.msra.mxu0 0
    %135 = vmatprep.mubr.bf16.mxu0 0
    %136 = vmatmul.mubr.bf16.gmra.mrb[0].mxu0 %v101
    %v137 = vpop.f32.mrb[0].mxu0
    %v138 = vadd.f32 0.0, %v137
    %v139 = vpop.f32.mrb[0].mxu0
    %v140 = vpop.f32.mrb[0].mxu0
    %v141 = vpop.f32.mrb[0].mxu0
    %142 = vdwg.mxu0
    %v143 = vpack.c.bf16 %v138, %v138
    %v144 = vld [vmem:[%s2] sm:$0x1]
    %v146 = vpack.i.b16 %v144, %v144
    %v148 = vlaneseq
    %v149 = vshrl.u32 %v148, 7
    %v150 = vsub.s32 0, %v149
    %v151 = vrot.slane %v146, %v150
    %v152 = vadd.bf16 %v143, %v151
    %v153 = vmax.bf16 %v152, 0
    %v154 = vld [vmem:[#allocation7] sm:$0xf]
    %v155 = vld [vmem:[#allocation7 + $0x4] sm:$0xf]
    %v156 = vld [vmem:[#allocation7 + $0x8] sm:$0xf]
    %v157 = vld [vmem:[#allocation7 + $0xc] sm:$0xf]
    %v158 = vld [vmem:[#allocation7 + $0x10] sm:$0xf]
    %v159 = vld [vmem:[#allocation7 + $0x14] sm:$0xf]
    %v160 = vld [vmem:[#allocation7 + $0x18] sm:$0xf]
    %v161 = vld [vmem:[#allocation7 + $0x1c] sm:$0xf]
    %v162 = vld [vmem:[#allocation7 + $0x20] sm:$0xf]
    %v163 = vld [vmem:[#allocation7 + $0x24] sm:$0xf]
    %v164 = vld [vmem:[#allocation7 + $0x28] sm:$0xf]
    %v165 = vld [vmem:[#allocation7 + $0x2c] sm:$0xf]
    %v166 = vld [vmem:[#allocation7 + $0x30] sm:$0xf]
    %v167 = vld [vmem:[#allocation7 + $0x34] sm:$0xf]
    %v168 = vld [vmem:[#allocation7 + $0x38] sm:$0xf]
    %v169 = vld [vmem:[#allocation7 + $0x3c] sm:$0xf]
    %v186 = vunpack.c.l.b16 %v154
    %v187 = vunpack.c.l.b16 %v155
    %v188 = vunpack.c.l.b16 %v156
    %v189 = vunpack.c.l.b16 %v157
    %v190 = vunpack.c.l.b16 %v158
    %v191 = vunpack.c.l.b16 %v159
    %v192 = vunpack.c.l.b16 %v160
    %v193 = vunpack.c.l.b16 %v161
    %v194 = vunpack.c.l.b16 %v162
    %v195 = vunpack.c.l.b16 %v163
    %v196 = vunpack.c.l.b16 %v164
    %v197 = vunpack.c.l.b16 %v165
    %v198 = vunpack.c.l.b16 %v166
    %v199 = vunpack.c.l.b16 %v167
    %v200 = vunpack.c.l.b16 %v168
    %v201 = vunpack.c.l.b16 %v169
    %v202 = vpack.c.b16 %v187, %v186
    %v203 = vpack.c.b16 %v189, %v188
    %v204 = vpack.c.b16 %v191, %v190
    %v205 = vpack.c.b16 %v193, %v192
    %v206 = vpack.c.b16 %v195, %v194
    %v207 = vpack.c.b16 %v197, %v196
    %v208 = vpack.c.b16 %v199, %v198
    %v209 = vpack.c.b16 %v201, %v200
    %218 = vmatprep.subr.bf16.mxu0 0
    %219 = vmatpush1.bf16.msra.mxu0 %v202
    %220 = vmatprep.subr.bf16.mxu0 0
    %221 = vmatpush1.bf16.msra.mxu0 %v203
    %222 = vmatprep.subr.bf16.mxu0 0
    %223 = vmatpush1.bf16.msra.mxu0 %v204
    %224 = vmatprep.subr.bf16.mxu0 0
    %225 = vmatpush1.bf16.msra.mxu0 %v205
    %226 = vmatprep.subr.bf16.mxu0 0
    %227 = vmatpush1.bf16.msra.mxu0 %v206
    %228 = vmatprep.subr.bf16.mxu0 0
    %229 = vmatpush1.bf16.msra.mxu0 %v207
    %230 = vmatprep.subr.bf16.mxu0 0
    %231 = vmatpush1.bf16.msra.mxu0 %v208
    %232 = vmatprep.subr.bf16.mxu0 0
    %233 = vmatpush1.bf16.msra.mxu0 %v209
    %234 = vmatprep.subr.bf16.mxu0 0
    %235 = vmatpush1.bf16.msra.mxu0 0
    %236 = vmatprep.subr.bf16.mxu0 0
    %237 = vmatpush1.bf16.msra.mxu0 0
    %238 = vmatprep.subr.bf16.mxu0 0
    %239 = vmatpush1.bf16.msra.mxu0 0
    %240 = vmatprep.subr.bf16.mxu0 0
    %241 = vmatpush1.bf16.msra.mxu0 0
    %242 = vmatprep.subr.bf16.mxu0 0
    %243 = vmatpush1.bf16.msra.mxu0 0
    %244 = vmatprep.subr.bf16.mxu0 0
    %245 = vmatpush1.bf16.msra.mxu0 0
    %246 = vmatprep.subr.bf16.mxu0 0
    %247 = vmatpush1.bf16.msra.mxu0 0
    %248 = vmatprep.subr.bf16.mxu0 0
    %249 = vmatpush1.bf16.msra.mxu0 0
    %250 = vmatprep.mubr.bf16.mxu0 0
    %251 = vmatmul.mubr.bf16.gmra.mrb[0].mxu0 %v153
    %v252 = vpop.f32.mrb[0].mxu0
    %v253 = vadd.f32 0.0, %v252
    %v254 = vpop.f32.mrb[0].mxu0
    %v255 = vpop.f32.mrb[0].mxu0
    %v256 = vpop.f32.mrb[0].mxu0
    %257 = vdwg.mxu0
    %v258 = vpack.c.bf16 %v253, %v253
    %v259 = vld [vmem:[%s4] sm:$0x1]
    %v261 = vpack.i.b16 %v259, %v259
    %v263 = vlaneseq
    %v264 = vshrl.u32 %v263, 7
    %v265 = vsub.s32 0, %v264
    %v266 = vrot.slane %v261, %v265
    %v267 = vadd.bf16 %v258, %v266
    %v268 = vmax.bf16 %v267, 0
    %v269 = vld [vmem:[#allocation8] sm:$0xf]
    %v270 = vld [vmem:[#allocation8 + $0x4] sm:$0xf]
    %v271 = vld [vmem:[#allocation8 + $0x8] sm:$0xf]
    %v272 = vld [vmem:[#allocation8 + $0xc] sm:$0xf]
    %v273 = vld [vmem:[#allocation8 + $0x10] sm:$0xf]
    %v274 = vld [vmem:[#allocation8 + $0x14] sm:$0xf]
    %v275 = vld [vmem:[#allocation8 + $0x18] sm:$0xf]
    %v276 = vld [vmem:[#allocation8 + $0x1c] sm:$0xf]
    %v277 = vld [vmem:[#allocation8 + $0x20] sm:$0xf]
    %v278 = vld [vmem:[#allocation8 + $0x24] sm:$0xf]
    %v279 = vld [vmem:[#allocation8 + $0x28] sm:$0xf]
    %v280 = vld [vmem:[#allocation8 + $0x2c] sm:$0xf]
    %v281 = vld [vmem:[#allocation8 + $0x30] sm:$0xf]
    %v282 = vld [vmem:[#allocation8 + $0x34] sm:$0xf]
    %v283 = vld [vmem:[#allocation8 + $0x38] sm:$0xf]
    %v284 = vld [vmem:[#allocation8 + $0x3c] sm:$0xf]
    %v285 = vld [vmem:[%s6] sm:$0x1]
    %v287 = vlaneseq
    %v288 = vshrl.u32 %v287, 7
    %v289 = vsub.s32 0, %v288
    %v290 = vrot.slane %v285, %v289
    %v308 = vunpack.c.l.b16 %v269
    %v309 = vunpack.c.l.b16 %v270
    %v310 = vunpack.c.l.b16 %v271
    %v311 = vunpack.c.l.b16 %v272
    %v312 = vunpack.c.l.b16 %v273
    %v313 = vunpack.c.l.b16 %v274
    %v314 = vunpack.c.l.b16 %v275
    %v315 = vunpack.c.l.b16 %v276
    %v316 = vunpack.c.l.b16 %v277
    %v317 = vunpack.c.l.b16 %v278
    %v318 = vunpack.c.l.b16 %v279
    %v319 = vunpack.c.l.b16 %v280
    %v320 = vunpack.c.l.b16 %v281
    %v321 = vunpack.c.l.b16 %v282
    %v322 = vunpack.c.l.b16 %v283
    %v323 = vunpack.c.l.b16 %v284
    %v324 = vpack.c.b16 %v309, %v308
    %v325 = vpack.c.b16 %v311, %v310
    %v326 = vpack.c.b16 %v313, %v312
    %v327 = vpack.c.b16 %v315, %v314
    %v328 = vpack.c.b16 %v317, %v316
    %v329 = vpack.c.b16 %v319, %v318
    %v330 = vpack.c.b16 %v321, %v320
    %v331 = vpack.c.b16 %v323, %v322
    %340 = vmatprep.subr.bf16.mxu0 0
    %341 = vmatpush1.bf16.msra.mxu0 %v324
    %342 = vmatprep.subr.bf16.mxu0 0
    %343 = vmatpush1.bf16.msra.mxu0 %v325
    %344 = vmatprep.subr.bf16.mxu0 0
    %345 = vmatpush1.bf16.msra.mxu0 %v326
    %346 = vmatprep.subr.bf16.mxu0 0
    %347 = vmatpush1.bf16.msra.mxu0 %v327
    %348 = vmatprep.subr.bf16.mxu0 0
    %349 = vmatpush1.bf16.msra.mxu0 %v328
    %350 = vmatprep.subr.bf16.mxu0 0
    %351 = vmatpush1.bf16.msra.mxu0 %v329
    %352 = vmatprep.subr.bf16.mxu0 0
    %353 = vmatpush1.bf16.msra.mxu0 %v330
    %354 = vmatprep.subr.bf16.mxu0 0
    %355 = vmatpush1.bf16.msra.mxu0 %v331
    %356 = vmatprep.subr.bf16.mxu0 0
    %357 = vmatpush1.bf16.msra.mxu0 0
    %358 = vmatprep.subr.bf16.mxu0 0
    %359 = vmatpush1.bf16.msra.mxu0 0
    %360 = vmatprep.subr.bf16.mxu0 0
    %361 = vmatpush1.bf16.msra.mxu0 0
    %362 = vmatprep.subr.bf16.mxu0 0
    %363 = vmatpush1.bf16.msra.mxu0 0
    %364 = vmatprep.subr.bf16.mxu0 0
    %365 = vmatpush1.bf16.msra.mxu0 0
    %366 = vmatprep.subr.bf16.mxu0 0
    %367 = vmatpush1.bf16.msra.mxu0 0
    %368 = vmatprep.subr.bf16.mxu0 0
    %369 = vmatpush1.bf16.msra.mxu0 0
    %370 = vmatprep.subr.bf16.mxu0 0
    %371 = vmatpush1.bf16.msra.mxu0 0
    %372 = vmatprep.mubr.bf16.mxu0 0
    %373 = vmatmul.mubr.bf16.gmra.mrb[0].mxu0 %v268
    %v374 = vpop.f32.mrb[0].mxu0
    %v375 = vadd.f32 %v290, %v374
    %v376 = vpop.f32.mrb[0].mxu0
    %v377 = vpop.f32.mrb[0].mxu0
    %v378 = vpop.f32.mrb[0].mxu0
    %379 = vdwg.mxu0
    %v380 = vpack.c.bf16 %v375, %v375
    %381 = vst [vmem:[#allocation10] sm:$0xf] %v380
    // Predicated region
    $region46: #{tpu_custom_call.1} parent=1 // pred_check
      _
    $region47: #{tpu_custom_call.1} parent=1 // pred_check_branch
      %383 = sbr.rel (0) target = $region49
    $region48: #{tpu_custom_call.1} parent=1 // pred_region
      %s385 = ssub.s32 64, 64
      %386 = vsyncadd [#allocation4], %s385
      %s388 = sshll.u32 [#allocation10], 4
      %s389 = int_to_ptr.vmem [resolvable:$true] %s388
      %391 = dma.vmem_to_hbm [thread:$0]  %s389, 64, %s7, [#allocation4]
    $region49: #{tpu_custom_call.1} parent=1 // pred_fallthru
      _
    // Predicated region
    $region50: #{tpu_custom_call.1} parent=1 // pred_check
      _
    $region51: #{tpu_custom_call.1} parent=1 // pred_check_branch
      %393 = sbr.rel (0) target = $region53
    $region52: #{tpu_custom_call.1} parent=1 // pred_region
      %394 = dma.done [#allocation4], 64
    $region53: #{tpu_custom_call.1} parent=1 // pred_fallthru
      _
    %395 = vsyncpa [#allocation3], 1
    %396 = vsyncpa [#allocation6], 1
    %397 = vsyncpa [#allocation9], 1
    %398 = vsyncpa [#allocation4], 1

</llo_original>
